<compile_context>
chip_gen: v7x
topology: tpu7x:2x2x1
jax: 0.10.0
libtpu: 0.0.40
codegen_flags: <defaults>
</compile_context>

<pallas_src>
import jax
import jax.numpy as jnp
from jax.experimental import pallas as pl
from jax.experimental.pallas import tpu as pltpu


def _policy_kernel(x_ref, w1a_ref, w2_ref, b2_ref, o_ref, xaug_ref):
    n_in, tb = x_ref.shape
    n_out = o_ref.shape[0]

    # Bias-augmented activation [x; 1] in a persistent VMEM scratch.
    # The ones row is rewritten every step (cheap masked store) so the kernel
    # is correct even when the "parallel" batch axis is sharded across
    # TensorCores (each core has its own scratch instance).
    xaug_ref[pl.ds(0, n_in), :] = x_ref[...]
    xaug_ref[pl.ds(n_in, 1), :] = jnp.ones((1, tb), jnp.float32)

    # fc1 (+ bias folded into the matmul) and ReLU:
    #   (hidden, n_in+1) @ (n_in+1, tb) -> (hidden, tb)
    h = jnp.dot(w1a_ref[...], xaug_ref[...], preferred_element_type=jnp.float32)
    h = jnp.maximum(h, 0.0)

    # fc2: (n_out, hidden) @ (hidden, tb) -> (n_out, tb)
    logits = (jnp.dot(w2_ref[...], h, preferred_element_type=jnp.float32)
              + b2_ref[...])

    if n_out == 2:
        # 2-class softmax == sigmoid of the logit difference.  Avoids the
        # cross-sublane max/sum and halves the exp work; saturates cleanly
        # (no NaN) for large |l1-l0|.
        d = logits[1:2, :] - logits[0:1, :]                     # (1, tb)
        p0 = pl.reciprocal(1.0 + jnp.exp(d), approx=False)      # exact recip
        o_ref[pl.ds(0, 1), :] = p0
        o_ref[pl.ds(1, 1), :] = 1.0 - p0
    else:
        # General numerically-stable softmax over the class axis (axis 0).
        m = jnp.max(logits, axis=0, keepdims=True)
        e = jnp.exp(logits - m)
        denom = jnp.sum(e, axis=0, keepdims=True)
        o_ref[...] = e * pl.reciprocal(denom, approx=False)


def _round_up(v, m):
    return ((v + m - 1) // m) * m


def policy_forward_lane_major(x_t, w1, b1, w2, b2, *, block_b=32768):
    """Lane-major forward pass.

    x_t: (n_inputs, B) float32   -- batch on the lane (fast) axis
    w1:  (hidden, n_inputs)      -- PyTorch nn.Linear layout (out, in)
    b1:  (hidden,)
    w2:  (n_outputs, hidden)
    b2:  (n_outputs,)
    Returns probabilities of shape (n_outputs, B).
    """
    n_in, B = x_t.shape
    hidden = w1.shape[0]
    n_out = w2.shape[0]

    # --- batch tiling: big lane-aligned tiles, even tile count for v7x ------
    tb_cap = _round_up(block_b, 128)
    bp128 = _round_up(max(B, 1), 128)
    if bp128 <= tb_cap:
        n_tiles = 1
        tb = bp128
    else:
        n_tiles = -(-bp128 // tb_cap)
        if n_tiles % 2:                 # even grid keeps both v7x TCs busy
            n_tiles += 1
        tb = _round_up(-(-bp128 // n_tiles), 128)
    bp = n_tiles * tb

    if bp != B:
        x_t = jnp.pad(x_t, ((0, 0), (0, bp - B)))   # zero-pad batch columns

    # Fold fc1 bias into the weight matrix (extra K column); the kernel
    # supplies the matching ones row per tile.
    w1_aug = jnp.concatenate([w1, b1.reshape(hidden, 1)], axis=1)  # (h, n_in+1)
    b2_2d = b2.reshape(n_out, 1)

    out_t = pl.pallas_call(
        _policy_kernel,
        out_shape=jax.ShapeDtypeStruct((n_out, bp), jnp.float32),
        grid=(n_tiles,),
        in_specs=[
            pl.BlockSpec((n_in, tb), lambda i: (0, i)),           # x (pipelined)
            pl.BlockSpec((hidden, n_in + 1), lambda i: (0, 0)),   # w1|b1 resident
            pl.BlockSpec((n_out, hidden), lambda i: (0, 0)),      # w2 resident
            pl.BlockSpec((n_out, 1), lambda i: (0, 0)),           # b2 resident
        ],
        out_specs=pl.BlockSpec((n_out, tb), lambda i: (0, i)),    # lane-dense store
        scratch_shapes=[pltpu.VMEM((n_in + 1, tb), jnp.float32)],
        compiler_params=pltpu.CompilerParams(
            dimension_semantics=("parallel",),
            vmem_limit_bytes=32 * 1024 * 1024,
            # Let XLA fuse the caller-side transpose/pad of x into the operand
            # instead of materialising it in HBM.
            allow_input_fusion=[True, False, False, False],
        ),
    )(x_t, w1_aug, w2, b2_2d)

    return out_t[:, :B]


def policy_forward(x, w1, b1, w2, b2, *, block_b=32768):
    """PyTorch-layout forward: x is (B, n_inputs); returns (B, n_outputs)."""
    out_t = policy_forward_lane_major(x.T, w1, b1, w2, b2, block_b=block_b)
    return out_t.T


def init_params(key, n_inputs, n_outputs, hidden=32):
    """Mimics nn.Linear's uniform(-1/sqrt(fan_in), 1/sqrt(fan_in)) init.

    Weights are stored in PyTorch layout: (out_features, in_features)."""
    k1, k2, k3, k4 = jax.random.split(key, 4)
    bound1 = 1.0 / jnp.sqrt(jnp.float32(n_inputs))
    bound2 = 1.0 / jnp.sqrt(jnp.float32(hidden))
    w1 = jax.random.uniform(k1, (hidden, n_inputs), jnp.float32, -bound1, bound1)
    b1 = jax.random.uniform(k2, (hidden,), jnp.float32, -bound1, bound1)
    w2 = jax.random.uniform(k3, (n_outputs, hidden), jnp.float32, -bound2, bound2)
    b2 = jax.random.uniform(k4, (n_outputs,), jnp.float32, -bound2, bound2)
    return w1, b1, w2, b2


def reference_forward(x, w1, b1, w2, b2):
    h = jnp.maximum(x @ w1.T + b1, 0.0)
    logits = h @ w2.T + b2
    return jax.nn.softmax(logits, axis=-1)


if __name__ == "__main__":
    key = jax.random.PRNGKey(0)
    n_inputs, n_outputs, batch = 4, 2, 8   # CartPole-like sizes

    kx, kp = jax.random.split(key)
    x = jax.random.normal(kx, (batch, n_inputs), jnp.float32)
    w1, b1, w2, b2 = init_params(kp, n_inputs, n_outputs)

    fwd = jax.jit(policy_forward)
    out = jax.block_until_ready(fwd(x, w1, b1, w2, b2))

    ref = reference_forward(x, w1, b1, w2, b2)
    assert out.shape == (batch, n_outputs)
    assert out.dtype == jnp.float32
    assert jnp.allclose(out, ref, atol=1e-5, rtol=1e-5)
    # probabilities sum to 1 along last axis
    assert jnp.allclose(jnp.sum(out, axis=-1), 1.0, atol=1e-5)

    print("KERNEL_OK")
</pallas_src>

<mosaic_0001>
module attributes {stable_mosaic.version = 11 : i64} {
  func.func @_policy_kernel(%arg0: i32, %arg1: memref<4x128xf32, #tpu.memory_space<vmem>>, %arg2: memref<32x5xf32, #tpu.memory_space<vmem>>, %arg3: memref<2x32xf32, #tpu.memory_space<vmem>>, %arg4: memref<2x1xf32, #tpu.memory_space<vmem>>, %arg5: memref<2x128xf32, #tpu.memory_space<vmem>>, %arg6: memref<5x128xf32, #tpu.memory_space<vmem>>) attributes {dimension_semantics = [#tpu.dimension_semantics<parallel>], iteration_bounds = array<i64: 1>, scalar_prefetch = 0 : i64, scratch_operands = 1 : i64, tpu.core_type = #tpu.core_type<tc>, window_params = [{transform_indices = @transform_0, window_bounds = array<i64: 4, 128>}, {pipeline_mode = #tpu.pipeline_mode<synchronous>, transform_indices = @transform_1, window_bounds = array<i64: 32, 5>}, {pipeline_mode = #tpu.pipeline_mode<synchronous>, transform_indices = @transform_2, window_bounds = array<i64: 2, 32>}, {pipeline_mode = #tpu.pipeline_mode<synchronous>, transform_indices = @transform_3, window_bounds = array<i64: 2, 1>}, {transform_indices = @transform_4, window_bounds = array<i64: 2, 128>}]} {
    %c0 = arith.constant 0 : index
    %c0_0 = arith.constant 0 : index
    %0 = vector.load %arg1[%c0, %c0_0] : memref<4x128xf32, #tpu.memory_space<vmem>>, vector<4x128xf32>
    %c0_1 = arith.constant 0 : index
    %c0_2 = arith.constant 0 : index
    %1 = vector.load %arg6[%c0_1, %c0_2] : memref<5x128xf32, #tpu.memory_space<vmem>>, vector<4x128xf32>
    tpu.vector_store %arg6[%c0_1, %c0_2], %0 {strides = array<i32>} : memref<5x128xf32, #tpu.memory_space<vmem>>, vector<4x128xf32>,
    %cst = arith.constant 1.000000e+00 : f32
    %2 = vector.broadcast %cst : f32 to vector<1x128xf32>
    %c4 = arith.constant 4 : index
    %c0_3 = arith.constant 0 : index
    %3 = vector.load %arg6[%c4, %c0_3] : memref<5x128xf32, #tpu.memory_space<vmem>>, vector<1x128xf32>
    tpu.vector_store %arg6[%c4, %c0_3], %2 {strides = array<i32>} : memref<5x128xf32, #tpu.memory_space<vmem>>, vector<1x128xf32>,
    %c0_4 = arith.constant 0 : index
    %c0_5 = arith.constant 0 : index
    %4 = vector.load %arg2[%c0_4, %c0_5] : memref<32x5xf32, #tpu.memory_space<vmem>>, vector<32x5xf32>
    %c0_6 = arith.constant 0 : index
    %c0_7 = arith.constant 0 : index
    %5 = vector.load %arg6[%c0_6, %c0_7] : memref<5x128xf32, #tpu.memory_space<vmem>>, vector<5x128xf32>
    %cst_8 = arith.constant dense<0.000000e+00> : vector<32x128xf32>
    %6 = tpu.matmul %4, %5, %cst_8 {dimension_numbers = #tpu.dot_dimension_numbers<[1], [0], [0], [1], [0, 0, 1, 1], [], []>} : vector<32x5xf32>, vector<5x128xf32>, vector<32x128xf32> -> vector<32x128xf32>
    %cst_9 = arith.constant 0.000000e+00 : f32
    %7 = vector.broadcast %cst_9 : f32 to vector<32x128xf32>
    %8 = arith.maximumf %6, %7 : vector<32x128xf32>
    %c0_10 = arith.constant 0 : index
    %c0_11 = arith.constant 0 : index
    %9 = vector.load %arg3[%c0_10, %c0_11] : memref<2x32xf32, #tpu.memory_space<vmem>>, vector<2x32xf32>
    %cst_12 = arith.constant dense<0.000000e+00> : vector<2x128xf32>
    %10 = tpu.matmul %9, %8, %cst_12 {dimension_numbers = #tpu.dot_dimension_numbers<[1], [0], [0], [1], [0, 0, 1, 1], [], []>} : vector<2x32xf32>, vector<32x128xf32>, vector<2x128xf32> -> vector<2x128xf32>
    %c0_13 = arith.constant 0 : index
    %c0_14 = arith.constant 0 : index
    %11 = vector.load %arg4[%c0_13, %c0_14] : memref<2x1xf32, #tpu.memory_space<vmem>>, vector<2x1xf32>
    %12 = vector.broadcast %11 : vector<2x1xf32> to vector<2x128xf32>
    %13 = arith.addf %10, %12 : vector<2x128xf32>
    %14 = vector.extract_strided_slice %13 {offsets = [1, 0], sizes = [1, 128], strides = [1, 1]} : vector<2x128xf32> to vector<1x128xf32>
    %15 = vector.extract_strided_slice %13 {offsets = [0, 0], sizes = [1, 128], strides = [1, 1]} : vector<2x128xf32> to vector<1x128xf32>
    %16 = arith.subf %14, %15 : vector<1x128xf32>
    %17 = math.exp %16 : vector<1x128xf32>
    %cst_15 = arith.constant 1.000000e+00 : f32
    %18 = vector.broadcast %cst_15 : f32 to vector<1x128xf32>
    %19 = arith.addf %18, %17 : vector<1x128xf32>
    %20 = tpu.reciprocal %19 : vector<1x128xf32> -> vector<1x128xf32>
    %c0_16 = arith.constant 0 : index
    %c0_17 = arith.constant 0 : index
    %21 = vector.load %arg5[%c0_16, %c0_17] : memref<2x128xf32, #tpu.memory_space<vmem>>, vector<1x128xf32>
    tpu.vector_store %arg5[%c0_16, %c0_17], %20 {strides = array<i32>} : memref<2x128xf32, #tpu.memory_space<vmem>>, vector<1x128xf32>,
    %cst_18 = arith.constant 1.000000e+00 : f32
    %22 = vector.broadcast %cst_18 : f32 to vector<1x128xf32>
    %23 = arith.subf %22, %20 : vector<1x128xf32>
    %c1 = arith.constant 1 : index
    %c0_19 = arith.constant 0 : index
    %24 = vector.load %arg5[%c1, %c0_19] : memref<2x128xf32, #tpu.memory_space<vmem>>, vector<1x128xf32>
    tpu.vector_store %arg5[%c1, %c0_19], %23 {strides = array<i32>} : memref<2x128xf32, #tpu.memory_space<vmem>>, vector<1x128xf32>,
    return
  }
  func.func @transform_0(%arg0: i32) -> (i32, i32) {
    %c0_i32 = arith.constant 0 : i32
    %c0_i32_0 = arith.constant 0 : i32
    return %c0_i32, %arg0 : i32, i32
  }
  func.func @transform_1(%arg0: i32) -> (i32, i32) {
    %c0_i32 = arith.constant 0 : i32
    %c0_i32_0 = arith.constant 0 : i32
    %c0_i32_1 = arith.constant 0 : i32
    return %c0_i32, %c0_i32_0 : i32, i32
  }
  func.func @transform_2(%arg0: i32) -> (i32, i32) {
    %c0_i32 = arith.constant 0 : i32
    %c0_i32_0 = arith.constant 0 : i32
    %c0_i32_1 = arith.constant 0 : i32
    return %c0_i32, %c0_i32_0 : i32, i32
  }
  func.func @transform_3(%arg0: i32) -> (i32, i32) {
    %c0_i32 = arith.constant 0 : i32
    %c0_i32_0 = arith.constant 0 : i32
    %c0_i32_1 = arith.constant 0 : i32
    return %c0_i32, %c0_i32_0 : i32, i32
  }
  func.func @transform_4(%arg0: i32) -> (i32, i32) {
    %c0_i32 = arith.constant 0 : i32
    %c0_i32_0 = arith.constant 0 : i32
    return %c0_i32, %arg0 : i32, i32
  }
}

</mosaic_0001>

<llo_original>
// kernel: policy_forward.2
$region0: #{policy_forward.2}
  #allocation0 [shape = 'u32[]', space=smem, size = 0x4, offset = 0x4, fixed_abs, tag = 'smem constant byte address 0x4 - core index']
  #allocation1 [shape = 'u32[144,128]{1,0:T(1,128)}', space=vmem, size = 0x12000, scoped, tag = 'internal scratch']
  #allocation2 [shape = 'f32[5,128]{1,0:T(8,128)}', space=vmem, size = 0x1000, scoped, tag = 'scratch operand']
  #allocation3 [shape = 'u32[2048]{0}', space=vmem, size = 0x2000, scoped, tag = 'scoped memory for policy_forward.2']
  #allocation4 [shape = 'u32[2048]{0}', space=vmem, size = 0x2000, scoped, tag = 'scoped memory for policy_forward.2']
  #allocation5 [shape = 'u32[2048]{0}', space=vmem, size = 0x2000, scoped, tag = 'scoped memory for policy_forward.2']
  #allocation6 [shape = 'u32[2048]{0}', space=vmem, size = 0x2000, scoped, tag = 'scoped memory for policy_forward.2']
  #allocation7 [shape = 'u32[2048]{0}', space=vmem, size = 0x2000, scoped, tag = 'scoped memory for policy_forward.2']
  %s0 = inlined_call_operand.vmem [shape: f32[32,5], index: 0, kind: input, shape index: {}]
  %s1 = inlined_call_operand.vmem [shape: f32[2,32], index: 1, kind: input, shape index: {}]
  %s2 = inlined_call_operand.vmem [shape: f32[2,1], index: 2, kind: input, shape index: {}]
  %s3 = inlined_call_operand.vmem [shape: f32[4,8], index: 3, kind: input, shape index: {}]
  %s4 = inlined_call_operand.<no memory space> [shape: f32[], index: 4, kind: input, shape index: {}]
  %s5 = inlined_call_operand.vmem [shape: f32[2,128], index: 5, kind: output, shape index: {}]
  %s6 = sld [smem:[#allocation0]]
  $region26: #{policy_forward.2} parent=0
    _
  %s8 = ssub.s32 1, %s6
  %s9 = scalar_select 0, %s8, %s6
  %v10 = vstv %s4
  $region1: #{policy_forward.2} parent=0
    #allocation8 [shape = 'u8[2048]{0}', space=vmem, size = 0x800, dematerialized = true, scoped, tag = 'FusionAdapter Buffer %fusion.1 = f32[4,128]{1,0:T(4,128)} fusion(%param_3.1, %param_4), kind=kLoop, calls=%fused_computation.2.clone, metadata={op_name="jit(policy_forward)/jit(_pad)/pad" stack_frame_id=9}']
    // Predicated region
    $region2: #{policy_forward.2} parent=1 // pred_check
      _
    $region3: #{policy_forward.2} parent=1 // pred_check_branch
      %12 = sbr.rel (0) target = $region5
    $region4: #{policy_forward.2} parent=1 // pred_region
      _
    $region5: #{policy_forward.2} parent=1 // pred_fallthru
      _
    // Predicated region
    $region6: #{policy_forward.2} parent=1 // pred_check
      _
    $region7: #{policy_forward.2} parent=1 // pred_check_branch
      %14 = sbr.rel (0) target = $region9
    $region8: #{policy_forward.2} parent=1 // pred_region
      _
    $region9: #{policy_forward.2} parent=1 // pred_fallthru
      _
    // Predicated region
    $region10: #{policy_forward.2} parent=1 // pred_check
      _
    $region11: #{policy_forward.2} parent=1 // pred_check_branch
      %16 = sbr.rel (0) target = $region13
    $region12: #{policy_forward.2} parent=1 // pred_region
      _
    $region13: #{policy_forward.2} parent=1 // pred_fallthru
      _
    // Predicated region
    $region14: #{policy_forward.2} parent=1 // pred_check
      _
    $region15: #{policy_forward.2} parent=1 // pred_check_branch
      %18 = sbr.rel (0) target = $region17
    $region16: #{policy_forward.2} parent=1 // pred_region
      _
    $region17: #{policy_forward.2} parent=1 // pred_fallthru
      _
    %v19 = vld [vmem:[%s3] sm:$0xf]
    %v20 = vlaneseq
    %v21 = vshrl.u32 %v20, 7
    %vm23 = vcmp.lt.s32.totalorder %v21, 4
    %v24 = vsel %vm23, %v19, %v10
    %v25 = vlaneseq
    %v26 = vand.u32 %v25, 127
    %vm28 = vcmp.lt.s32.totalorder %v26, 8
    %v29 = vsel %vm28, %v24, %v10
    %31 = vst [vmem:[#allocation8] sm:$0xf] %v29
    %v32 = vld [vmem:[#allocation8] sm:$0xf]
    %33 = vst [vmem:[#allocation2] sm:$0xf] %v32
    %34 = vst [vmem:[#allocation2 + $0x4] sm:$0x1] 1.0
    %v35 = vld [vmem:[%s0] sm:$0xff]
    %v36 = vld [vmem:[%s0 + $0x8] sm:$0xff]
    %v37 = vld [vmem:[%s0 + $0x10] sm:$0xff]
    %v38 = vld [vmem:[%s0 + $0x18] sm:$0xff]
    %v39 = vld [vmem:[#allocation2] sm:$0x1f]
    %vm40 = vcmask 39936
    %v42 = vsel %vm40, %v35, 0
    %v45 = vsel %vm40, %v36, 0
    %v48 = vsel %vm40, %v37, 0
    %v51 = vsel %vm40, %v38, 0
    %vm53 = vcmask 1044480
    %v55 = vsel %vm53, %v39, 0
    %57 = vmatprep.subr.mxu0 0.0
    %58 = vmatpush1.msra.mxu0 %v55
    %59 = vmatprep.subr.mxu0 0.0
    %60 = vmatpush1.msra.mxu0 0.0
    %61 = vmatprep.subr.mxu0 0.0
    %62 = vmatpush1.msra.mxu0 0.0
    %63 = vmatprep.subr.mxu0 0.0
    %64 = vmatpush1.msra.mxu0 0.0
    %65 = vmatprep.subr.mxu0 0.0
    %66 = vmatpush1.msra.mxu0 0.0
    %67 = vmatprep.subr.mxu0 0.0
    %68 = vmatpush1.msra.mxu0 0.0
    %69 = vmatprep.subr.mxu0 0.0
    %70 = vmatpush1.msra.mxu0 0.0
    %71 = vmatprep.subr.mxu0 0.0
    %72 = vmatpush1.msra.mxu0 0.0
    %73 = vmatprep.subr.mxu0 0.0
    %74 = vmatpush1.msra.mxu0 0.0
    %75 = vmatprep.subr.mxu0 0.0
    %76 = vmatpush1.msra.mxu0 0.0
    %77 = vmatprep.subr.mxu0 0.0
    %78 = vmatpush1.msra.mxu0 0.0
    %79 = vmatprep.subr.mxu0 0.0
    %80 = vmatpush1.msra.mxu0 0.0
    %81 = vmatprep.subr.mxu0 0.0
    %82 = vmatpush1.msra.mxu0 0.0
    %83 = vmatprep.subr.mxu0 0.0
    %84 = vmatpush1.msra.mxu0 0.0
    %85 = vmatprep.subr.mxu0 0.0
    %86 = vmatpush1.msra.mxu0 0.0
    %87 = vmatprep.subr.mxu0 0.0
    %88 = vmatpush1.msra.mxu0 0.0
    %89 = vmatprep.subr.mxu0 0.0
    %90 = vmatpush1.msra.mxu0 0.0
    %91 = vmatprep.subr.mxu0 0.0
    %92 = vmatpush1.msra.mxu0 0.0
    %93 = vmatprep.subr.mxu0 0.0
    %94 = vmatpush1.msra.mxu0 0.0
    %95 = vmatprep.subr.mxu0 0.0
    %96 = vmatpush1.msra.mxu0 0.0
    %97 = vmatprep.subr.mxu0 0.0
    %98 = vmatpush1.msra.mxu0 0.0
    %99 = vmatprep.subr.mxu0 0.0
    %100 = vmatpush1.msra.mxu0 0.0
    %101 = vmatprep.subr.mxu0 0.0
    %102 = vmatpush1.msra.mxu0 0.0
    %103 = vmatprep.subr.mxu0 0.0
    %104 = vmatpush1.msra.mxu0 0.0
    %105 = vmatprep.subr.mxu0 0.0
    %106 = vmatpush1.msra.mxu0 0.0
    %107 = vmatprep.subr.mxu0 0.0
    %108 = vmatpush1.msra.mxu0 0.0
    %109 = vmatprep.subr.mxu0 0.0
    %110 = vmatpush1.msra.mxu0 0.0
    %111 = vmatprep.subr.mxu0 0.0
    %112 = vmatpush1.msra.mxu0 0.0
    %113 = vmatprep.subr.mxu0 0.0
    %114 = vmatpush1.msra.mxu0 0.0
    %115 = vmatprep.subr.mxu0 0.0
    %116 = vmatpush1.msra.mxu0 0.0
    %117 = vmatprep.subr.mxu0 0.0
    %118 = vmatpush1.msra.mxu0 0.0
    %119 = vmatprep.subr.mxu0 0.0
    %120 = vmatpush1.msra.mxu0 0.0
    %121 = vmatprep.mubr.f32.mxu0 0.0
    %122 = vmatmul.mubr.f32.gmra.mrb[0].mxu0 %v42
    %v123 = vpop.f32.mrb[0].mxu0
    %v124 = vadd.f32 0.0, %v123
    %v125 = vpop.f32.mrb[0].mxu0
    %126 = vmatprep.mubr.f32.mxu0 0.0
    %127 = vmatmul.mubr.f32.gmra.mrb[0].mxu0 %v45
    %v128 = vpop.f32.mrb[0].mxu0
    %v129 = vadd.f32 0.0, %v128
    %v130 = vpop.f32.mrb[0].mxu0
    %131 = vmatprep.mubr.f32.mxu0 0.0
    %132 = vmatmul.mubr.f32.gmra.mrb[0].mxu0 %v48
    %v133 = vpop.f32.mrb[0].mxu0
    %v134 = vadd.f32 0.0, %v133
    %v135 = vpop.f32.mrb[0].mxu0
    %136 = vmatprep.mubr.f32.mxu0 0.0
    %137 = vmatmul.mubr.f32.gmra.mrb[0].mxu0 %v51
    %v138 = vpop.f32.mrb[0].mxu0
    %v139 = vadd.f32 0.0, %v138
    %v140 = vpop.f32.mrb[0].mxu0
    %141 = vdwg.mxu0
    %v142 = vmax.f32 %v124, 0.0
    %v143 = vmax.f32 %v129, 0.0
    %v144 = vmax.f32 %v134, 0.0
    %v145 = vmax.f32 %v139, 0.0
    %v146 = vld [vmem:[%s1] sm:$0x3]
    %v147 = vld [vmem:[%s2] sm:$0x3]
    %149 = vset.pattern.permute.xlu0 0
    %150 = vperm.xlu0 %149, %v147
    %v151 = vpop.permute.xlu0 %150
    %vm153 = vcmask 261120
    %v155 = vsel %vm153, %v146, 0
    %157 = vmatprep.subr.mxu0 0.0
    %158 = vmatpush1.msra.mxu0 %v142
    %159 = vmatprep.subr.mxu0 0.0
    %160 = vmatpush1.msra.mxu0 %v143
    %161 = vmatprep.subr.mxu0 0.0
    %162 = vmatpush1.msra.mxu0 %v144
    %163 = vmatprep.subr.mxu0 0.0
    %164 = vmatpush1.msra.mxu0 %v145
    %165 = vmatprep.subr.mxu0 0.0
    %166 = vmatpush1.msra.mxu0 0.0
    %167 = vmatprep.subr.mxu0 0.0
    %168 = vmatpush1.msra.mxu0 0.0
    %169 = vmatprep.subr.mxu0 0.0
    %170 = vmatpush1.msra.mxu0 0.0
    %171 = vmatprep.subr.mxu0 0.0
    %172 = vmatpush1.msra.mxu0 0.0
    %173 = vmatprep.subr.mxu0 0.0
    %174 = vmatpush1.msra.mxu0 0.0
    %175 = vmatprep.subr.mxu0 0.0
    %176 = vmatpush1.msra.mxu0 0.0
    %177 = vmatprep.subr.mxu0 0.0
    %178 = vmatpush1.msra.mxu0 0.0
    %179 = vmatprep.subr.mxu0 0.0
    %180 = vmatpush1.msra.mxu0 0.0
    %181 = vmatprep.subr.mxu0 0.0
    %182 = vmatpush1.msra.mxu0 0.0
    %183 = vmatprep.subr.mxu0 0.0
    %184 = vmatpush1.msra.mxu0 0.0
    %185 = vmatprep.subr.mxu0 0.0
    %186 = vmatpush1.msra.mxu0 0.0
    %187 = vmatprep.subr.mxu0 0.0
    %188 = vmatpush1.msra.mxu0 0.0
    %189 = vmatprep.subr.mxu0 0.0
    %190 = vmatpush1.msra.mxu0 0.0
    %191 = vmatprep.subr.mxu0 0.0
    %192 = vmatpush1.msra.mxu0 0.0
    %193 = vmatprep.subr.mxu0 0.0
    %194 = vmatpush1.msra.mxu0 0.0
    %195 = vmatprep.subr.mxu0 0.0
    %196 = vmatpush1.msra.mxu0 0.0
    %197 = vmatprep.subr.mxu0 0.0
    %198 = vmatpush1.msra.mxu0 0.0
    %199 = vmatprep.subr.mxu0 0.0
    %200 = vmatpush1.msra.mxu0 0.0
    %201 = vmatprep.subr.mxu0 0.0
    %202 = vmatpush1.msra.mxu0 0.0
    %203 = vmatprep.subr.mxu0 0.0
    %204 = vmatpush1.msra.mxu0 0.0
    %205 = vmatprep.subr.mxu0 0.0
    %206 = vmatpush1.msra.mxu0 0.0
    %207 = vmatprep.subr.mxu0 0.0
    %208 = vmatpush1.msra.mxu0 0.0
    %209 = vmatprep.subr.mxu0 0.0
    %210 = vmatpush1.msra.mxu0 0.0
    %211 = vmatprep.subr.mxu0 0.0
    %212 = vmatpush1.msra.mxu0 0.0
    %213 = vmatprep.subr.mxu0 0.0
    %214 = vmatpush1.msra.mxu0 0.0
    %215 = vmatprep.subr.mxu0 0.0
    %216 = vmatpush1.msra.mxu0 0.0
    %217 = vmatprep.subr.mxu0 0.0
    %218 = vmatpush1.msra.mxu0 0.0
    %219 = vmatprep.subr.mxu0 0.0
    %220 = vmatpush1.msra.mxu0 0.0
    %221 = vmatprep.mubr.f32.mxu0 0.0
    %222 = vmatmul.mubr.f32.gmra.mrb[0].mxu0 %v155
    %v223 = vpop.f32.mrb[0].mxu0
    %v224 = vadd.f32 %v151, %v223
    %v225 = vpop.f32.mrb[0].mxu0
    %226 = vdwg.mxu0
    %v228 = vrot.slane %v224, 7
    %v230 = vsub.f32 %v224, %v228
    %v231 = vmul.f32 %v230, 1.442695
    %v232 = vpow.pop %v231
    %v233 = vadd.f32 %v232, 1.0
    %v234 = vrcp.pop %v233
    %235 = vst [vmem:[%s5 - $0x1] sm:$0x2] %v234
    %v236 = vsub.f32 1.0, %v234
    %237 = vst [vmem:[%s5] sm:$0x2] %v236
    // Predicated region
    $region18: #{policy_forward.2} parent=1 // pred_check
      _
    $region19: #{policy_forward.2} parent=1 // pred_check_branch
      %239 = sbr.rel (0) target = $region21
    $region20: #{policy_forward.2} parent=1 // pred_region
      _
    $region21: #{policy_forward.2} parent=1 // pred_fallthru
      _
    // Predicated region
    $region22: #{policy_forward.2} parent=1 // pred_check
      _
    $region23: #{policy_forward.2} parent=1 // pred_check_branch
      %241 = sbr.rel (0) target = $region25
    $region24: #{policy_forward.2} parent=1 // pred_region
      _
    $region25: #{policy_forward.2} parent=1 // pred_fallthru
      _

</llo_original>
